<compile_context>
chip_gen: v7x
topology: tpu7x:2x2x1
jax: 0.10.0
libtpu: 0.0.40
codegen_flags: <defaults>
</compile_context>

<pallas_src>
import functools

import jax
import jax.numpy as jnp
from jax.experimental import pallas as pl
from jax.experimental.pallas import tpu as pltpu


def _round_up(v, m):
    return ((v + m - 1) // m) * m


def _vq_kernel(x_ref, et2_ref, e_ref, e2_ref, iota_ref,
               q_ref, ind_ref,
               best_s, best_i, best_q):
    c = pl.program_id(1)

    @pl.when(c == 0)
    def _():
        best_s[...] = jnp.full_like(best_s, jnp.inf)
        best_i[...] = jnp.zeros_like(best_i)
        best_q[...] = jnp.zeros_like(best_q)

    x = x_ref[...]                                   # (tile_n, e_dim)
    iota_i = iota_ref[...]                           # (1, tile_c) int32, global ids
    iota_f = iota_i.astype(jnp.float32)              # tiny per-block cast

    # Partial squared distance ||e||^2 - 2 x.e ; the -2 is folded into et2 in
    # the wrapper, f32 accumulation on the MXU.
    scores = (jnp.dot(x, et2_ref[...], preferred_element_type=jnp.float32)
              + e2_ref[...])                         # (tile_n, tile_c) f32

    # First-minimal index within this codebook block (torch .min(1) tie-break),
    # via min-reductions and the resident iota row (no argmin, no full-tile
    # iota materialisation). Indices stay exact in f32 for n_e_pad < 2^24.
    loc_min = jnp.min(scores, axis=1, keepdims=True)                   # (tile_n, 1)
    loc_idx_f = jnp.min(jnp.where(scores == loc_min, iota_f,
                                  jnp.float32(3e9)),
                        axis=1, keepdims=True)                         # (tile_n, 1)
    loc_idx = loc_idx_f.astype(jnp.int32)

    # Gather candidate codebook rows with a one-hot matmul (MXU-friendly).
    onehot = (iota_f == loc_idx_f).astype(e_ref.dtype)                 # (tile_n, tile_c)
    q_cand = jnp.dot(onehot, e_ref[...], preferred_element_type=jnp.float32)

    # Running best across codebook blocks; strict "<" keeps the first index on
    # ties (matches torch).
    better = loc_min < best_s[...]                                     # (tile_n, 1)
    best_s[...] = jnp.where(better, loc_min, best_s[...])
    best_i[...] = jnp.where(better, loc_idx, best_i[...])
    best_q[...] = jnp.where(better, q_cand, best_q[...])

    @pl.when(c == pl.num_programs(1) - 1)
    def _():
        q_ref[...] = best_q[...].astype(q_ref.dtype)
        ind_ref[...] = best_i[...]


@functools.partial(jax.jit, static_argnames=("tile_n", "tile_c"))
def quantize_forward(x, embed, *, tile_n=None, tile_c=None):
    """Eval-mode Quantize.forward: returns (quantize, embed_ind)."""
    n_e, e_dim = embed.shape

    # Preserve caller's activation dtype (bf16 halves the dominant x/q HBM
    # streams and runs the MXU at native bf16 rate); accumulate in f32.
    if x.dtype in (jnp.dtype(jnp.bfloat16), jnp.dtype(jnp.float32)):
        cdtype = x.dtype
    else:
        cdtype = jnp.dtype(jnp.float32)
    flat = x.reshape(-1, e_dim).astype(cdtype)       # same as torch .view(-1, e_dim)
    n = flat.shape[0]

    # Row tiling: large tiles amortise ~0.35us/step overhead; for large inputs
    # keep at least two grid steps so megacore can split the row axis.
    if tile_n is None:
        base = 2048 if e_dim <= 64 else 1024
        if n <= base:
            tile_n = _round_up(n, 8)
        else:
            tile_n = min(base, _round_up(-(-n // 2), 8))
    tile_n = max(8, int(tile_n))
    grid_n = pl.cdiv(n, tile_n)      # no wrapper pad of flat / slice of q:
                                     # the final partial block is masked.

    # Codebook: lane-dense padding to a multiple of tile_c (multiple of 128);
    # padded entries get a huge ||e||^2 so the argmin never selects them.
    n_e_pad0 = _round_up(max(n_e, 128), 128)
    if tile_c is None:
        tile_c = min(n_e_pad0, 512)
    tile_c = _round_up(int(tile_c), 128)
    n_e_pad = _round_up(n_e_pad0, tile_c)
    grid_c = n_e_pad // tile_c

    embed_f32 = embed.astype(jnp.float32)
    embed_p = jnp.pad(embed_f32, ((0, n_e_pad - n_e), (0, 0)))
    et2 = (-2.0 * embed_p).T.astype(cdtype)                        # (e_dim, n_e_pad)
    e_cb = embed_p.astype(cdtype)                                  # (n_e_pad, e_dim)
    valid = (jnp.arange(n_e_pad) < n_e)[None, :]
    e2 = jnp.where(valid, jnp.sum(embed_p * embed_p, axis=1)[None, :],
                   jnp.float32(1e30))                              # (1, n_e_pad) f32
    iota = jnp.arange(n_e_pad, dtype=jnp.int32)[None, :]           # (1, n_e_pad)

    q, ind = pl.pallas_call(
        _vq_kernel,
        out_shape=(
            jax.ShapeDtypeStruct((n, e_dim), cdtype),
            jax.ShapeDtypeStruct((n, 1), jnp.int32),
        ),
        grid=(grid_n, grid_c),
        in_specs=[
            pl.BlockSpec((tile_n, e_dim), lambda i, c: (i, 0)),    # x rows
            pl.BlockSpec((e_dim, tile_c), lambda i, c: (0, c)),    # -2 * e^T block
            pl.BlockSpec((tile_c, e_dim), lambda i, c: (c, 0)),    # e block (gather)
            pl.BlockSpec((1, tile_c), lambda i, c: (0, c)),        # ||e||^2 block
            pl.BlockSpec((1, tile_c), lambda i, c: (0, c)),        # global id row
        ],
        out_specs=(
            pl.BlockSpec((tile_n, e_dim), lambda i, c: (i, 0)),
            pl.BlockSpec((tile_n, 1), lambda i, c: (i, 0)),
        ),
        scratch_shapes=[
            pltpu.VMEM((tile_n, 1), jnp.float32),     # running min score
            pltpu.VMEM((tile_n, 1), jnp.int32),       # running argmin (global id)
            pltpu.VMEM((tile_n, e_dim), jnp.float32),  # running best codebook row
        ],
        compiler_params=pltpu.CompilerParams(
            dimension_semantics=("parallel", "arbitrary"),
            vmem_limit_bytes=32 * 1024 * 1024),
    )(flat, et2, e_cb, e2, iota)

    # torch returns int64 indices; int32 here (fine for n_e < 2**31).
    return q, ind[:, 0]


def _init_embed(key, n_e, e_dim):
    """embed = F.normalize(torch.randn(n_e, e_dim))  (row-wise L2 normalize)."""
    e = jax.random.normal(key, (n_e, e_dim), dtype=jnp.float32)
    norm = jnp.maximum(jnp.linalg.norm(e, axis=1, keepdims=True), 1e-12)
    return e / norm


def _reference(x, embed):
    e_dim = embed.shape[1]
    flat = x.reshape(-1, e_dim)
    d2 = jnp.sum((flat[:, None, :] - embed[None, :, :]) ** 2, axis=-1)
    ind = jnp.argmin(d2, axis=1)
    return embed[ind], ind, d2


if __name__ == "__main__":
    key = jax.random.PRNGKey(0)
    k_x, k_e = jax.random.split(key)

    n_e, e_dim = 64, 16
    # NCHW feature-map-like input; forward flattens it row-major into (-1, e_dim)
    # exactly like the PyTorch .view call: 2*4*16*16 / 16 = 128 rows.
    x = jax.random.normal(k_x, (2, 4, 16, 16), dtype=jnp.float32)
    embed = _init_embed(k_e, n_e, e_dim)

    q, ind = quantize_forward(x, embed)
    jax.block_until_ready((q, ind))

    q_ref, ind_ref, d2_ref = _reference(x, embed)
    n = d2_ref.shape[0]
    assert q.shape == (n, e_dim) and ind.shape == (n,)
    # The expanded distance form only changes rounding; an argmin flip can only
    # happen at a (near-)tie, so accept any index whose true distance matches
    # the minimum to tolerance.
    d_sel = d2_ref[jnp.arange(n), ind]
    d_min = d2_ref.min(axis=1)
    assert bool(jnp.all((ind == ind_ref.astype(jnp.int32))
                        | (d_sel <= d_min + 1e-4))), "index mismatch"
    assert jnp.allclose(q, embed[ind], atol=1e-5), "quantize mismatch"

    # bf16 I/O path smoke test (x and q stay bf16 end to end).
    xb = x.astype(jnp.bfloat16)
    eb = embed.astype(jnp.bfloat16)
    qb, indb = quantize_forward(xb, eb)
    jax.block_until_ready((qb, indb))
    assert qb.dtype == jnp.bfloat16 and qb.shape == (n, e_dim)
    assert jnp.allclose(qb.astype(jnp.float32),
                        eb[indb].astype(jnp.float32), atol=1e-2), "bf16 mismatch"

    print("KERNEL_OK")
</pallas_src>

<mosaic_0001>
module attributes {stable_mosaic.version = 11 : i64} {
  func.func @_vq_kernel(%arg0: i32, %arg1: i32, %arg2: memref<128x16xf32, #tpu.memory_space<vmem>>, %arg3: memref<16x128xf32, #tpu.memory_space<vmem>>, %arg4: memref<128x16xf32, #tpu.memory_space<vmem>>, %arg5: memref<1x128xf32, #tpu.memory_space<vmem>>, %arg6: memref<1x128xi32, #tpu.memory_space<vmem>>, %arg7: memref<128x16xf32, #tpu.memory_space<vmem>>, %arg8: memref<128x1xi32, #tpu.memory_space<vmem>>, %arg9: memref<128x1xf32, #tpu.memory_space<vmem>>, %arg10: memref<128x1xi32, #tpu.memory_space<vmem>>, %arg11: memref<128x16xf32, #tpu.memory_space<vmem>>) attributes {dimension_semantics = [#tpu.dimension_semantics<parallel>, #tpu.dimension_semantics<arbitrary>], iteration_bounds = array<i64: 1, 1>, scalar_prefetch = 0 : i64, scratch_operands = 3 : i64, tpu.core_type = #tpu.core_type<tc>, window_params = [{transform_indices = @transform_0, window_bounds = array<i64: 128, 16>}, {transform_indices = @transform_1, window_bounds = array<i64: 16, 128>}, {transform_indices = @transform_2, window_bounds = array<i64: 128, 16>}, {transform_indices = @transform_3, window_bounds = array<i64: 1, 128>}, {transform_indices = @transform_4, window_bounds = array<i64: 1, 128>}, {transform_indices = @transform_5, window_bounds = array<i64: 128, 16>}, {transform_indices = @transform_6, window_bounds = array<i64: 128, 1>}]} {
    %c0_i32 = arith.constant 0 : i32
    %0 = arith.cmpi eq, %arg1, %c0_i32 : i32
    %1 = arith.extui %0 : i1 to i32
    %c0_i32_0 = arith.constant 0 : i32
    %2 = arith.cmpi ne, %1, %c0_i32_0 : i32
    scf.if %2 {
      %cst_30 = arith.constant 0x7F800000 : f32
      %45 = vector.broadcast %cst_30 : f32 to vector<128x1xf32>
      %c0_31 = arith.constant 0 : index
      %c0_32 = arith.constant 0 : index
      %46 = vector.load %arg9[%c0_31, %c0_32] : memref<128x1xf32, #tpu.memory_space<vmem>>, vector<128x1xf32>
      tpu.vector_store %arg9[%c0_31, %c0_32], %45 {strides = array<i32>} : memref<128x1xf32, #tpu.memory_space<vmem>>, vector<128x1xf32>,
      %c0_i32_33 = arith.constant 0 : i32
      %47 = vector.broadcast %c0_i32_33 : i32 to vector<128x1xi32>
      %c0_34 = arith.constant 0 : index
      %c0_35 = arith.constant 0 : index
      %48 = vector.load %arg10[%c0_34, %c0_35] : memref<128x1xi32, #tpu.memory_space<vmem>>, vector<128x1xi32>
      tpu.vector_store %arg10[%c0_34, %c0_35], %47 {strides = array<i32>} : memref<128x1xi32, #tpu.memory_space<vmem>>, vector<128x1xi32>,
      %cst_36 = arith.constant 0.000000e+00 : f32
      %49 = vector.broadcast %cst_36 : f32 to vector<128x16xf32>
      %c0_37 = arith.constant 0 : index
      %c0_38 = arith.constant 0 : index
      %50 = vector.load %arg11[%c0_37, %c0_38] : memref<128x16xf32, #tpu.memory_space<vmem>>, vector<128x16xf32>
      tpu.vector_store %arg11[%c0_37, %c0_38], %49 {strides = array<i32>} : memref<128x16xf32, #tpu.memory_space<vmem>>, vector<128x16xf32>,
    } else {
    }
    %c0 = arith.constant 0 : index
    %c0_1 = arith.constant 0 : index
    %3 = vector.load %arg2[%c0, %c0_1] : memref<128x16xf32, #tpu.memory_space<vmem>>, vector<128x16xf32>
    %c0_2 = arith.constant 0 : index
    %c0_3 = arith.constant 0 : index
    %4 = vector.load %arg6[%c0_2, %c0_3] : memref<1x128xi32, #tpu.memory_space<vmem>>, vector<1x128xi32>
    %5 = arith.sitofp %4 : vector<1x128xi32> to vector<1x128xf32>
    %c0_4 = arith.constant 0 : index
    %c0_5 = arith.constant 0 : index
    %6 = vector.load %arg3[%c0_4, %c0_5] : memref<16x128xf32, #tpu.memory_space<vmem>>, vector<16x128xf32>
    %cst = arith.constant dense<0.000000e+00> : vector<128x128xf32>
    %7 = tpu.matmul %3, %6, %cst {dimension_numbers = #tpu.dot_dimension_numbers<[1], [0], [0], [1], [0, 0, 1, 1], [], []>} : vector<128x16xf32>, vector<16x128xf32>, vector<128x128xf32> -> vector<128x128xf32>
    %c0_6 = arith.constant 0 : index
    %c0_7 = arith.constant 0 : index
    %8 = vector.load %arg5[%c0_6, %c0_7] : memref<1x128xf32, #tpu.memory_space<vmem>>, vector<1x128xf32>
    %9 = vector.broadcast %8 : vector<1x128xf32> to vector<128x128xf32>
    %10 = arith.addf %7, %9 : vector<128x128xf32>
    %cst_8 = arith.constant dense<0x7F800000> : vector<128xf32>
    %11 = vector.multi_reduction <minimumf>, %10, %cst_8 [1] : vector<128x128xf32> to vector<128xf32>
    %12 = vector.shape_cast %11 : vector<128xf32> to vector<128x1xf32>
    %13 = vector.broadcast %12 : vector<128x1xf32> to vector<128x128xf32>
    %14 = arith.cmpf oeq, %10, %13 : vector<128x128xf32>
    %cst_9 = arith.constant 3.000000e+09 : f32
    %15 = vector.shape_cast %5 : vector<1x128xf32> to vector<1x128xf32>
    %16 = vector.broadcast %15 : vector<1x128xf32> to vector<128x128xf32>
    %17 = vector.broadcast %cst_9 : f32 to vector<128x128xf32>
    %18 = arith.select %14, %16, %17 : vector<128x128xi1>, vector<128x128xf32>
    %cst_10 = arith.constant dense<0x7F800000> : vector<128xf32>
    %19 = vector.multi_reduction <minimumf>, %18, %cst_10 [1] : vector<128x128xf32> to vector<128xf32>
    %20 = vector.shape_cast %19 : vector<128xf32> to vector<128x1xf32>
    %21 = arith.fptosi %20 : vector<128x1xf32> to vector<128x1xi32>
    %22 = vector.broadcast %5 : vector<1x128xf32> to vector<128x128xf32>
    %23 = vector.broadcast %20 : vector<128x1xf32> to vector<128x128xf32>
    %24 = arith.cmpf oeq, %22, %23 : vector<128x128xf32>
    %25 = arith.extui %24 : vector<128x128xi1> to vector<128x128xi32>
    %26 = arith.sitofp %25 : vector<128x128xi32> to vector<128x128xf32>
    %c0_11 = arith.constant 0 : index
    %c0_12 = arith.constant 0 : index
    %27 = vector.load %arg4[%c0_11, %c0_12] : memref<128x16xf32, #tpu.memory_space<vmem>>, vector<128x16xf32>
    %cst_13 = arith.constant dense<0.000000e+00> : vector<128x16xf32>
    %28 = tpu.matmul %26, %27, %cst_13 {dimension_numbers = #tpu.dot_dimension_numbers<[1], [0], [0], [1], [0, 0, 1, 1], [], []>} : vector<128x128xf32>, vector<128x16xf32>, vector<128x16xf32> -> vector<128x16xf32>
    %c0_14 = arith.constant 0 : index
    %c0_15 = arith.constant 0 : index
    %29 = vector.load %arg9[%c0_14, %c0_15] : memref<128x1xf32, #tpu.memory_space<vmem>>, vector<128x1xf32>
    %30 = arith.cmpf olt, %12, %29 : vector<128x1xf32>
    %c0_16 = arith.constant 0 : index
    %c0_17 = arith.constant 0 : index
    %31 = vector.load %arg9[%c0_16, %c0_17] : memref<128x1xf32, #tpu.memory_space<vmem>>, vector<128x1xf32>
    %32 = arith.select %30, %12, %31 : vector<128x1xi1>, vector<128x1xf32>
    %c0_18 = arith.constant 0 : index
    %c0_19 = arith.constant 0 : index
    %33 = vector.load %arg9[%c0_18, %c0_19] : memref<128x1xf32, #tpu.memory_space<vmem>>, vector<128x1xf32>
    tpu.vector_store %arg9[%c0_18, %c0_19], %32 {strides = array<i32>} : memref<128x1xf32, #tpu.memory_space<vmem>>, vector<128x1xf32>,
    %c0_20 = arith.constant 0 : index
    %c0_21 = arith.constant 0 : index
    %34 = vector.load %arg10[%c0_20, %c0_21] : memref<128x1xi32, #tpu.memory_space<vmem>>, vector<128x1xi32>
    %35 = arith.select %30, %21, %34 : vector<128x1xi1>, vector<128x1xi32>
    %c0_22 = arith.constant 0 : index
    %c0_23 = arith.constant 0 : index
    %36 = vector.load %arg10[%c0_22, %c0_23] : memref<128x1xi32, #tpu.memory_space<vmem>>, vector<128x1xi32>
    tpu.vector_store %arg10[%c0_22, %c0_23], %35 {strides = array<i32>} : memref<128x1xi32, #tpu.memory_space<vmem>>, vector<128x1xi32>,
    %c0_24 = arith.constant 0 : index
    %c0_25 = arith.constant 0 : index
    %37 = vector.load %arg11[%c0_24, %c0_25] : memref<128x16xf32, #tpu.memory_space<vmem>>, vector<128x16xf32>
    %38 = vector.shape_cast %30 : vector<128x1xi1> to vector<128x1xi1>
    %39 = vector.broadcast %38 : vector<128x1xi1> to vector<128x16xi1>
    %40 = arith.select %39, %28, %37 : vector<128x16xi1>, vector<128x16xf32>
    %c0_26 = arith.constant 0 : index
    %c0_27 = arith.constant 0 : index
    %41 = vector.load %arg11[%c0_26, %c0_27] : memref<128x16xf32, #tpu.memory_space<vmem>>, vector<128x16xf32>
    tpu.vector_store %arg11[%c0_26, %c0_27], %40 {strides = array<i32>} : memref<128x16xf32, #tpu.memory_space<vmem>>, vector<128x16xf32>,
    %c0_i32_28 = arith.constant 0 : i32
    %42 = arith.cmpi eq, %arg1, %c0_i32_28 : i32
    %43 = arith.extui %42 : i1 to i32
    %c0_i32_29 = arith.constant 0 : i32
    %44 = arith.cmpi ne, %43, %c0_i32_29 : i32
    scf.if %44 {
      %c0_30 = arith.constant 0 : index
      %c0_31 = arith.constant 0 : index
      %45 = vector.load %arg11[%c0_30, %c0_31] : memref<128x16xf32, #tpu.memory_space<vmem>>, vector<128x16xf32>
      %c0_32 = arith.constant 0 : index
      %c0_33 = arith.constant 0 : index
      %46 = vector.load %arg7[%c0_32, %c0_33] : memref<128x16xf32, #tpu.memory_space<vmem>>, vector<128x16xf32>
      tpu.vector_store %arg7[%c0_32, %c0_33], %45 {strides = array<i32>} : memref<128x16xf32, #tpu.memory_space<vmem>>, vector<128x16xf32>,
      %c0_34 = arith.constant 0 : index
      %c0_35 = arith.constant 0 : index
      %47 = vector.load %arg10[%c0_34, %c0_35] : memref<128x1xi32, #tpu.memory_space<vmem>>, vector<128x1xi32>
      %c0_36 = arith.constant 0 : index
      %c0_37 = arith.constant 0 : index
      %48 = vector.load %arg8[%c0_36, %c0_37] : memref<128x1xi32, #tpu.memory_space<vmem>>, vector<128x1xi32>
      tpu.vector_store %arg8[%c0_36, %c0_37], %47 {strides = array<i32>} : memref<128x1xi32, #tpu.memory_space<vmem>>, vector<128x1xi32>,
    } else {
    }
    return
  }
  func.func @transform_0(%arg0: i32, %arg1: i32) -> (i32, i32) {
    %c0_i32 = arith.constant 0 : i32
    %c0_i32_0 = arith.constant 0 : i32
    return %arg0, %c0_i32 : i32, i32
  }
  func.func @transform_1(%arg0: i32, %arg1: i32) -> (i32, i32) {
    %c0_i32 = arith.constant 0 : i32
    %c0_i32_0 = arith.constant 0 : i32
    return %c0_i32, %arg1 : i32, i32
  }
  func.func @transform_2(%arg0: i32, %arg1: i32) -> (i32, i32) {
    %c0_i32 = arith.constant 0 : i32
    %c0_i32_0 = arith.constant 0 : i32
    return %arg1, %c0_i32 : i32, i32
  }
  func.func @transform_3(%arg0: i32, %arg1: i32) -> (i32, i32) {
    %c0_i32 = arith.constant 0 : i32
    %c0_i32_0 = arith.constant 0 : i32
    return %c0_i32, %arg1 : i32, i32
  }
  func.func @transform_4(%arg0: i32, %arg1: i32) -> (i32, i32) {
    %c0_i32 = arith.constant 0 : i32
    %c0_i32_0 = arith.constant 0 : i32
    return %c0_i32, %arg1 : i32, i32
  }
  func.func @transform_5(%arg0: i32, %arg1: i32) -> (i32, i32) {
    %c0_i32 = arith.constant 0 : i32
    %c0_i32_0 = arith.constant 0 : i32
    return %arg0, %c0_i32 : i32, i32
  }
  func.func @transform_6(%arg0: i32, %arg1: i32) -> (i32, i32) {
    %c0_i32 = arith.constant 0 : i32
    %c0_i32_0 = arith.constant 0 : i32
    return %arg0, %c0_i32 : i32, i32
  }
}

</mosaic_0001>

<llo_original>
// kernel: quantize_forward.1
$region0: #{quantize_forward.1}
  #allocation0 [shape = 'u32[]', space=smem, size = 0x4, offset = 0x4, fixed_abs, tag = 'smem constant byte address 0x4 - core index']
  #allocation1 [shape = 'u32[144,128]{1,0:T(1,128)}', space=vmem, size = 0x12000, scoped, tag = 'internal scratch']
  #allocation2 [shape = 'f32[128,1]{1,0:T(8,128)}', space=vmem, size = 0x10000, scoped, tag = 'scratch operand']
  #allocation3 [shape = 's32[128,1]{1,0:T(8,128)}', space=vmem, size = 0x10000, scoped, tag = 'scratch operand']
  #allocation4 [shape = 'f32[128,16]{1,0:T(8,128)}', space=vmem, size = 0x10000, scoped, tag = 'scratch operand']
  %s0 = inlined_call_operand.vmem [shape: f32[128,16], index: 0, kind: input, shape index: {}]
  %s1 = inlined_call_operand.vmem [shape: f32[16,128], index: 1, kind: input, shape index: {}]
  %s2 = inlined_call_operand.vmem [shape: f32[128,16], index: 2, kind: input, shape index: {}]
  %s3 = inlined_call_operand.vmem [shape: f32[1,128], index: 3, kind: input, shape index: {}]
  %s4 = inlined_call_operand.vmem [shape: s32[1,128], index: 4, kind: input, shape index: {}]
  %s5 = inlined_call_operand.vmem [shape: f32[128,16], index: 5, kind: output, shape index: {0}]
  %s6 = inlined_call_operand.vmem [shape: s32[128,1], index: 6, kind: output, shape index: {1}]
  %7 = xla_tuple %s5, %s6
  %s8 = sld [smem:[#allocation0]]
  $region46: #{quantize_forward.1} parent=0
    _
  %s10 = ssub.s32 1, %s8
  %s11 = scalar_select 0, %s10, %s8
  // Predicated region
  $region2: #{quantize_forward.1} parent=0 // pred_check
    _
  $region3: #{quantize_forward.1} parent=0 // pred_check_branch
    %13 = sbr.rel (0) target = $region5
  $region4: #{quantize_forward.1} parent=0 // pred_region
    _
  $region5: #{quantize_forward.1} parent=0 // pred_fallthru
    _
  // Predicated region
  $region6: #{quantize_forward.1} parent=0 // pred_check
    _
  $region7: #{quantize_forward.1} parent=0 // pred_check_branch
    %15 = sbr.rel (0) target = $region9
  $region8: #{quantize_forward.1} parent=0 // pred_region
    _
  $region9: #{quantize_forward.1} parent=0 // pred_fallthru
    _
  // Predicated region
  $region10: #{quantize_forward.1} parent=0 // pred_check
    _
  $region11: #{quantize_forward.1} parent=0 // pred_check_branch
    %17 = sbr.rel (0) target = $region13
  $region12: #{quantize_forward.1} parent=0 // pred_region
    _
  $region13: #{quantize_forward.1} parent=0 // pred_fallthru
    _
  // Predicated region
  $region14: #{quantize_forward.1} parent=0 // pred_check
    _
  $region15: #{quantize_forward.1} parent=0 // pred_check_branch
    %19 = sbr.rel (0) target = $region17
  $region16: #{quantize_forward.1} parent=0 // pred_region
    _
  $region17: #{quantize_forward.1} parent=0 // pred_fallthru
    _
  // Predicated region
  $region18: #{quantize_forward.1} parent=0 // pred_check
    _
  $region19: #{quantize_forward.1} parent=0 // pred_check_branch
    %21 = sbr.rel (0) target = $region21
  $region20: #{quantize_forward.1} parent=0 // pred_region
    _
  $region21: #{quantize_forward.1} parent=0 // pred_fallthru
    _
  %p22 = scmp.eq.s32.totalorder 0, 0
  // Predicated region
  $region22: #{quantize_forward.1} parent=0 // pred_check
    %p23 = pneg %p22
  $region23: #{quantize_forward.1} parent=0 // pred_check_branch
    %25 = sbr.rel (%p23) target = $region25
  $region24: #{quantize_forward.1} parent=0 // pred_region
    %vm26 = vcmask 7168
    %27 = vst.msk [vmem:[#allocation2] sm:$0xff] %vm26, inf
    %28 = vst.msk [vmem:[#allocation2 + $0x8] sm:$0xff] %vm26, inf
    %29 = vst.msk [vmem:[#allocation2 + $0x10] sm:$0xff] %vm26, inf
    %30 = vst.msk [vmem:[#allocation2 + $0x18] sm:$0xff] %vm26, inf
    %31 = vst.msk [vmem:[#allocation2 + $0x20] sm:$0xff] %vm26, inf
    %32 = vst.msk [vmem:[#allocation2 + $0x28] sm:$0xff] %vm26, inf
    %33 = vst.msk [vmem:[#allocation2 + $0x30] sm:$0xff] %vm26, inf
    %34 = vst.msk [vmem:[#allocation2 + $0x38] sm:$0xff] %vm26, inf
    %35 = vst.msk [vmem:[#allocation2 + $0x40] sm:$0xff] %vm26, inf
    %36 = vst.msk [vmem:[#allocation2 + $0x48] sm:$0xff] %vm26, inf
    %37 = vst.msk [vmem:[#allocation2 + $0x50] sm:$0xff] %vm26, inf
    %38 = vst.msk [vmem:[#allocation2 + $0x58] sm:$0xff] %vm26, inf
    %39 = vst.msk [vmem:[#allocation2 + $0x60] sm:$0xff] %vm26, inf
    %40 = vst.msk [vmem:[#allocation2 + $0x68] sm:$0xff] %vm26, inf
    %41 = vst.msk [vmem:[#allocation2 + $0x70] sm:$0xff] %vm26, inf
    %42 = vst.msk [vmem:[#allocation2 + $0x78] sm:$0xff] %vm26, inf
    %43 = vst.msk [vmem:[#allocation3] sm:$0xff] %vm26, 0
    %44 = vst.msk [vmem:[#allocation3 + $0x8] sm:$0xff] %vm26, 0
    %45 = vst.msk [vmem:[#allocation3 + $0x10] sm:$0xff] %vm26, 0
    %46 = vst.msk [vmem:[#allocation3 + $0x18] sm:$0xff] %vm26, 0
    %47 = vst.msk [vmem:[#allocation3 + $0x20] sm:$0xff] %vm26, 0
    %48 = vst.msk [vmem:[#allocation3 + $0x28] sm:$0xff] %vm26, 0
    %49 = vst.msk [vmem:[#allocation3 + $0x30] sm:$0xff] %vm26, 0
    %50 = vst.msk [vmem:[#allocation3 + $0x38] sm:$0xff] %vm26, 0
    %51 = vst.msk [vmem:[#allocation3 + $0x40] sm:$0xff] %vm26, 0
    %52 = vst.msk [vmem:[#allocation3 + $0x48] sm:$0xff] %vm26, 0
    %53 = vst.msk [vmem:[#allocation3 + $0x50] sm:$0xff] %vm26, 0
    %54 = vst.msk [vmem:[#allocation3 + $0x58] sm:$0xff] %vm26, 0
    %55 = vst.msk [vmem:[#allocation3 + $0x60] sm:$0xff] %vm26, 0
    %56 = vst.msk [vmem:[#allocation3 + $0x68] sm:$0xff] %vm26, 0
    %57 = vst.msk [vmem:[#allocation3 + $0x70] sm:$0xff] %vm26, 0
    %58 = vst.msk [vmem:[#allocation3 + $0x78] sm:$0xff] %vm26, 0
    %vm59 = vcmask 130048
    %60 = vst.msk [vmem:[#allocation4] sm:$0xff] %vm59, 0.0
    %61 = vst.msk [vmem:[#allocation4 + $0x8] sm:$0xff] %vm59, 0.0
    %62 = vst.msk [vmem:[#allocation4 + $0x10] sm:$0xff] %vm59, 0.0
    %63 = vst.msk [vmem:[#allocation4 + $0x18] sm:$0xff] %vm59, 0.0
    %64 = vst.msk [vmem:[#allocation4 + $0x20] sm:$0xff] %vm59, 0.0
    %65 = vst.msk [vmem:[#allocation4 + $0x28] sm:$0xff] %vm59, 0.0
    %66 = vst.msk [vmem:[#allocation4 + $0x30] sm:$0xff] %vm59, 0.0
    %67 = vst.msk [vmem:[#allocation4 + $0x38] sm:$0xff] %vm59, 0.0
    %68 = vst.msk [vmem:[#allocation4 + $0x40] sm:$0xff] %vm59, 0.0
    %69 = vst.msk [vmem:[#allocation4 + $0x48] sm:$0xff] %vm59, 0.0
    %70 = vst.msk [vmem:[#allocation4 + $0x50] sm:$0xff] %vm59, 0.0
    %71 = vst.msk [vmem:[#allocation4 + $0x58] sm:$0xff] %vm59, 0.0
    %72 = vst.msk [vmem:[#allocation4 + $0x60] sm:$0xff] %vm59, 0.0
    %73 = vst.msk [vmem:[#allocation4 + $0x68] sm:$0xff] %vm59, 0.0
    %74 = vst.msk [vmem:[#allocation4 + $0x70] sm:$0xff] %vm59, 0.0
    %75 = vst.msk [vmem:[#allocation4 + $0x78] sm:$0xff] %vm59, 0.0
  $region25: #{quantize_forward.1} parent=0 // pred_fallthru
    _
  %v76 = vld [vmem:[%s0] sm:$0xff]
  %v77 = vld [vmem:[%s0 + $0x8] sm:$0xff]
  %v78 = vld [vmem:[%s0 + $0x10] sm:$0xff]
  %v79 = vld [vmem:[%s0 + $0x18] sm:$0xff]
  %v80 = vld [vmem:[%s0 + $0x20] sm:$0xff]
  %v81 = vld [vmem:[%s0 + $0x28] sm:$0xff]
  %v82 = vld [vmem:[%s0 + $0x30] sm:$0xff]
  %v83 = vld [vmem:[%s0 + $0x38] sm:$0xff]
  %v84 = vld [vmem:[%s0 + $0x40] sm:$0xff]
  %v85 = vld [vmem:[%s0 + $0x48] sm:$0xff]
  %v86 = vld [vmem:[%s0 + $0x50] sm:$0xff]
  %v87 = vld [vmem:[%s0 + $0x58] sm:$0xff]
  %v88 = vld [vmem:[%s0 + $0x60] sm:$0xff]
  %v89 = vld [vmem:[%s0 + $0x68] sm:$0xff]
  %v90 = vld [vmem:[%s0 + $0x70] sm:$0xff]
  %v91 = vld [vmem:[%s0 + $0x78] sm:$0xff]
  %v92 = vld [vmem:[%s4] sm:$0x1]
  %v93 = vcvt.s32.f32 %v92
  %v94 = vld [vmem:[%s1] sm:$0xff]
  %v95 = vld [vmem:[%s1 + $0x8] sm:$0xff]
  %v96 = vld [vmem:[%s3] sm:$0x1]
  %v98 = vlaneseq
  %v99 = vshrl.u32 %v98, 7
  %v100 = vsub.s32 0, %v99
  %v101 = vrot.slane %v96, %v100
  %vm103 = vcmask 130048
  %v105 = vsel %vm103, %v76, 0
  %v108 = vsel %vm103, %v77, 0
  %v111 = vsel %vm103, %v78, 0
  %v114 = vsel %vm103, %v79, 0
  %v117 = vsel %vm103, %v80, 0
  %v120 = vsel %vm103, %v81, 0
  %v123 = vsel %vm103, %v82, 0
  %v126 = vsel %vm103, %v83, 0
  %v129 = vsel %vm103, %v84, 0
  %v132 = vsel %vm103, %v85, 0
  %v135 = vsel %vm103, %v86, 0
  %v138 = vsel %vm103, %v87, 0
  %v141 = vsel %vm103, %v88, 0
  %v144 = vsel %vm103, %v89, 0
  %v147 = vsel %vm103, %v90, 0
  %v150 = vsel %vm103, %v91, 0
  %152 = vmatprep.subr.mxu0 0.0
  %153 = vmatpush1.msra.mxu0 %v94
  %154 = vmatprep.subr.mxu0 0.0
  %155 = vmatpush1.msra.mxu0 %v95
  %156 = vmatprep.subr.mxu0 0.0
  %157 = vmatpush1.msra.mxu0 0.0
  %158 = vmatprep.subr.mxu0 0.0
  %159 = vmatpush1.msra.mxu0 0.0
  %160 = vmatprep.subr.mxu0 0.0
  %161 = vmatpush1.msra.mxu0 0.0
  %162 = vmatprep.subr.mxu0 0.0
  %163 = vmatpush1.msra.mxu0 0.0
  %164 = vmatprep.subr.mxu0 0.0
  %165 = vmatpush1.msra.mxu0 0.0
  %166 = vmatprep.subr.mxu0 0.0
  %167 = vmatpush1.msra.mxu0 0.0
  %168 = vmatprep.subr.mxu0 0.0
  %169 = vmatpush1.msra.mxu0 0.0
  %170 = vmatprep.subr.mxu0 0.0
  %171 = vmatpush1.msra.mxu0 0.0
  %172 = vmatprep.subr.mxu0 0.0
  %173 = vmatpush1.msra.mxu0 0.0
  %174 = vmatprep.subr.mxu0 0.0
  %175 = vmatpush1.msra.mxu0 0.0
  %176 = vmatprep.subr.mxu0 0.0
  %177 = vmatpush1.msra.mxu0 0.0
  %178 = vmatprep.subr.mxu0 0.0
  %179 = vmatpush1.msra.mxu0 0.0
  %180 = vmatprep.subr.mxu0 0.0
  %181 = vmatpush1.msra.mxu0 0.0
  %182 = vmatprep.subr.mxu0 0.0
  %183 = vmatpush1.msra.mxu0 0.0
  %184 = vmatprep.subr.mxu0 0.0
  %185 = vmatpush1.msra.mxu0 0.0
  %186 = vmatprep.subr.mxu0 0.0
  %187 = vmatpush1.msra.mxu0 0.0
  %188 = vmatprep.subr.mxu0 0.0
  %189 = vmatpush1.msra.mxu0 0.0
  %190 = vmatprep.subr.mxu0 0.0
  %191 = vmatpush1.msra.mxu0 0.0
  %192 = vmatprep.subr.mxu0 0.0
  %193 = vmatpush1.msra.mxu0 0.0
  %194 = vmatprep.subr.mxu0 0.0
  %195 = vmatpush1.msra.mxu0 0.0
  %196 = vmatprep.subr.mxu0 0.0
  %197 = vmatpush1.msra.mxu0 0.0
  %198 = vmatprep.subr.mxu0 0.0
  %199 = vmatpush1.msra.mxu0 0.0
  %200 = vmatprep.subr.mxu0 0.0
  %201 = vmatpush1.msra.mxu0 0.0
  %202 = vmatprep.subr.mxu0 0.0
  %203 = vmatpush1.msra.mxu0 0.0
  %204 = vmatprep.subr.mxu0 0.0
  %205 = vmatpush1.msra.mxu0 0.0
  %206 = vmatprep.subr.mxu0 0.0
  %207 = vmatpush1.msra.mxu0 0.0
  %208 = vmatprep.subr.mxu0 0.0
  %209 = vmatpush1.msra.mxu0 0.0
  %210 = vmatprep.subr.mxu0 0.0
  %211 = vmatpush1.msra.mxu0 0.0
  %212 = vmatprep.subr.mxu0 0.0
  %213 = vmatpush1.msra.mxu0 0.0
  %214 = vmatprep.subr.mxu0 0.0
  %215 = vmatpush1.msra.mxu0 0.0
  %216 = vmatprep.mubr.f32.mxu0 0.0
  %217 = vmatmul.mubr.f32.gmra.mrb[0].mxu0 %v105
  %v218 = vpop.f32.mrb[0].mxu0
  %v219 = vadd.f32 %v101, %v218
  %v220 = vpop.f32.mrb[0].mxu0
  %221 = vmatprep.mubr.f32.mxu0 0.0
  %222 = vmatmul.mubr.f32.gmra.mrb[0].mxu0 %v108
  %v223 = vpop.f32.mrb[0].mxu0
  %v224 = vadd.f32 %v101, %v223
  %v225 = vpop.f32.mrb[0].mxu0
  %226 = vmatprep.mubr.f32.mxu0 0.0
  %227 = vmatmul.mubr.f32.gmra.mrb[0].mxu0 %v111
  %v228 = vpop.f32.mrb[0].mxu0
  %v229 = vadd.f32 %v101, %v228
  %v230 = vpop.f32.mrb[0].mxu0
  %231 = vmatprep.mubr.f32.mxu0 0.0
  %232 = vmatmul.mubr.f32.gmra.mrb[0].mxu0 %v114
  %v233 = vpop.f32.mrb[0].mxu0
  %v234 = vadd.f32 %v101, %v233
  %v235 = vpop.f32.mrb[0].mxu0
  %236 = vmatprep.mubr.f32.mxu0 0.0
  %237 = vmatmul.mubr.f32.gmra.mrb[0].mxu0 %v117
  %v238 = vpop.f32.mrb[0].mxu0
  %v239 = vadd.f32 %v101, %v238
  %v240 = vpop.f32.mrb[0].mxu0
  %241 = vmatprep.mubr.f32.mxu0 0.0
  %242 = vmatmul.mubr.f32.gmra.mrb[0].mxu0 %v120
  %v243 = vpop.f32.mrb[0].mxu0
  %v244 = vadd.f32 %v101, %v243
  %v245 = vpop.f32.mrb[0].mxu0
  %246 = vmatprep.mubr.f32.mxu0 0.0
  %247 = vmatmul.mubr.f32.gmra.mrb[0].mxu0 %v123
  %v248 = vpop.f32.mrb[0].mxu0
  %v249 = vadd.f32 %v101, %v248
  %v250 = vpop.f32.mrb[0].mxu0
  %251 = vmatprep.mubr.f32.mxu0 0.0
  %252 = vmatmul.mubr.f32.gmra.mrb[0].mxu0 %v126
  %v253 = vpop.f32.mrb[0].mxu0
  %v254 = vadd.f32 %v101, %v253
  %v255 = vpop.f32.mrb[0].mxu0
  %256 = vmatprep.mubr.f32.mxu0 0.0
  %257 = vmatmul.mubr.f32.gmra.mrb[0].mxu0 %v129
  %v258 = vpop.f32.mrb[0].mxu0
  %v259 = vadd.f32 %v101, %v258
  %v260 = vpop.f32.mrb[0].mxu0
  %261 = vmatprep.mubr.f32.mxu0 0.0
  %262 = vmatmul.mubr.f32.gmra.mrb[0].mxu0 %v132
  %v263 = vpop.f32.mrb[0].mxu0
  %v264 = vadd.f32 %v101, %v263
  %v265 = vpop.f32.mrb[0].mxu0
  %266 = vmatprep.mubr.f32.mxu0 0.0
  %267 = vmatmul.mubr.f32.gmra.mrb[0].mxu0 %v135
  %v268 = vpop.f32.mrb[0].mxu0
  %v269 = vadd.f32 %v101, %v268
  %v270 = vpop.f32.mrb[0].mxu0
  %271 = vmatprep.mubr.f32.mxu0 0.0
  %272 = vmatmul.mubr.f32.gmra.mrb[0].mxu0 %v138
  %v273 = vpop.f32.mrb[0].mxu0
  %v274 = vadd.f32 %v101, %v273
  %v275 = vpop.f32.mrb[0].mxu0
  %276 = vmatprep.mubr.f32.mxu0 0.0
  %277 = vmatmul.mubr.f32.gmra.mrb[0].mxu0 %v141
  %v278 = vpop.f32.mrb[0].mxu0
  %v279 = vadd.f32 %v101, %v278
  %v280 = vpop.f32.mrb[0].mxu0
  %281 = vmatprep.mubr.f32.mxu0 0.0
  %282 = vmatmul.mubr.f32.gmra.mrb[0].mxu0 %v144
  %v283 = vpop.f32.mrb[0].mxu0
  %v284 = vadd.f32 %v101, %v283
  %v285 = vpop.f32.mrb[0].mxu0
  %286 = vmatprep.mubr.f32.mxu0 0.0
  %287 = vmatmul.mubr.f32.gmra.mrb[0].mxu0 %v147
  %v288 = vpop.f32.mrb[0].mxu0
  %v289 = vadd.f32 %v101, %v288
  %v290 = vpop.f32.mrb[0].mxu0
  %291 = vmatprep.mubr.f32.mxu0 0.0
  %292 = vmatmul.mubr.f32.gmra.mrb[0].mxu0 %v150
  %v293 = vpop.f32.mrb[0].mxu0
  %v294 = vadd.f32 %v101, %v293
  %v295 = vpop.f32.mrb[0].mxu0
  %296 = vdwg.mxu0
  %297 = vmin.xlane.f32.xlu0 %v219
  %v298 = vpop.xlane.xlu0 %297
  %299 = vmin.xlane.f32.xlu0 %v224
  %v300 = vpop.xlane.xlu0 %299
  %301 = vmin.xlane.f32.xlu0 %v229
  %v302 = vpop.xlane.xlu0 %301
  %303 = vmin.xlane.f32.xlu0 %v234
  %v304 = vpop.xlane.xlu0 %303
  %305 = vmin.xlane.f32.xlu0 %v239
  %v306 = vpop.xlane.xlu0 %305
  %307 = vmin.xlane.f32.xlu0 %v244
  %v308 = vpop.xlane.xlu0 %307
  %309 = vmin.xlane.f32.xlu0 %v249
  %v310 = vpop.xlane.xlu0 %309
  %311 = vmin.xlane.f32.xlu0 %v254
  %v312 = vpop.xlane.xlu0 %311
  %313 = vmin.xlane.f32.xlu0 %v259
  %v314 = vpop.xlane.xlu0 %313
  %315 = vmin.xlane.f32.xlu0 %v264
  %v316 = vpop.xlane.xlu0 %315
  %317 = vmin.xlane.f32.xlu0 %v269
  %v318 = vpop.xlane.xlu0 %317
  %319 = vmin.xlane.f32.xlu0 %v274
  %v320 = vpop.xlane.xlu0 %319
  %321 = vmin.xlane.f32.xlu0 %v279
  %v322 = vpop.xlane.xlu0 %321
  %323 = vmin.xlane.f32.xlu0 %v284
  %v324 = vpop.xlane.xlu0 %323
  %325 = vmin.xlane.f32.xlu0 %v289
  %v326 = vpop.xlane.xlu0 %325
  %327 = vmin.xlane.f32.xlu0 %v294
  %v328 = vpop.xlane.xlu0 %327
  %vm329 = vcmp.eq.f32.partialorder %v219, %v298
  %vm330 = vcmp.eq.f32.partialorder %v224, %v300
  %vm331 = vcmp.eq.f32.partialorder %v229, %v302
  %vm332 = vcmp.eq.f32.partialorder %v234, %v304
  %vm333 = vcmp.eq.f32.partialorder %v239, %v306
  %vm334 = vcmp.eq.f32.partialorder %v244, %v308
  %vm335 = vcmp.eq.f32.partialorder %v249, %v310
  %vm336 = vcmp.eq.f32.partialorder %v254, %v312
  %vm337 = vcmp.eq.f32.partialorder %v259, %v314
  %vm338 = vcmp.eq.f32.partialorder %v264, %v316
  %vm339 = vcmp.eq.f32.partialorder %v269, %v318
  %vm340 = vcmp.eq.f32.partialorder %v274, %v320
  %vm341 = vcmp.eq.f32.partialorder %v279, %v322
  %vm342 = vcmp.eq.f32.partialorder %v284, %v324
  %vm343 = vcmp.eq.f32.partialorder %v289, %v326
  %vm344 = vcmp.eq.f32.partialorder %v294, %v328
  %v346 = vlaneseq
  %v347 = vshrl.u32 %v346, 7
  %v348 = vsub.s32 0, %v347
  %v349 = vrot.slane %v93, %v348
  %v351 = vsel %vm329, %v349, 3e+09
  %v352 = vsel %vm330, %v349, 3e+09
  %v353 = vsel %vm331, %v349, 3e+09
  %v354 = vsel %vm332, %v349, 3e+09
  %v355 = vsel %vm333, %v349, 3e+09
  %v356 = vsel %vm334, %v349, 3e+09
  %v357 = vsel %vm335, %v349, 3e+09
  %v358 = vsel %vm336, %v349, 3e+09
  %v359 = vsel %vm337, %v349, 3e+09
  %v360 = vsel %vm338, %v349, 3e+09
  %v361 = vsel %vm339, %v349, 3e+09
  %v362 = vsel %vm340, %v349, 3e+09
  %v363 = vsel %vm341, %v349, 3e+09
  %v364 = vsel %vm342, %v349, 3e+09
  %v365 = vsel %vm343, %v349, 3e+09
  %v366 = vsel %vm344, %v349, 3e+09
  %367 = vmin.xlane.f32.xlu0 %v351
  %v368 = vpop.xlane.xlu0 %367
  %369 = vmin.xlane.f32.xlu0 %v352
  %v370 = vpop.xlane.xlu0 %369
  %371 = vmin.xlane.f32.xlu0 %v353
  %v372 = vpop.xlane.xlu0 %371
  %373 = vmin.xlane.f32.xlu0 %v354
  %v374 = vpop.xlane.xlu0 %373
  %375 = vmin.xlane.f32.xlu0 %v355
  %v376 = vpop.xlane.xlu0 %375
  %377 = vmin.xlane.f32.xlu0 %v356
  %v378 = vpop.xlane.xlu0 %377
  %379 = vmin.xlane.f32.xlu0 %v357
  %v380 = vpop.xlane.xlu0 %379
  %381 = vmin.xlane.f32.xlu0 %v358
  %v382 = vpop.xlane.xlu0 %381
  %383 = vmin.xlane.f32.xlu0 %v359
  %v384 = vpop.xlane.xlu0 %383
  %385 = vmin.xlane.f32.xlu0 %v360
  %v386 = vpop.xlane.xlu0 %385
  %387 = vmin.xlane.f32.xlu0 %v361
  %v388 = vpop.xlane.xlu0 %387
  %389 = vmin.xlane.f32.xlu0 %v362
  %v390 = vpop.xlane.xlu0 %389
  %391 = vmin.xlane.f32.xlu0 %v363
  %v392 = vpop.xlane.xlu0 %391
  %393 = vmin.xlane.f32.xlu0 %v364
  %v394 = vpop.xlane.xlu0 %393
  %395 = vmin.xlane.f32.xlu0 %v365
  %v396 = vpop.xlane.xlu0 %395
  %397 = vmin.xlane.f32.xlu0 %v366
  %v398 = vpop.xlane.xlu0 %397
  %v399 = vcvt.f32.s32.to.zero.pseudo %v368
  %v400 = vcvt.f32.s32.to.zero.pseudo %v370
  %v401 = vcvt.f32.s32.to.zero.pseudo %v372
  %v402 = vcvt.f32.s32.to.zero.pseudo %v374
  %v403 = vcvt.f32.s32.to.zero.pseudo %v376
  %v404 = vcvt.f32.s32.to.zero.pseudo %v378
  %v405 = vcvt.f32.s32.to.zero.pseudo %v380
  %v406 = vcvt.f32.s32.to.zero.pseudo %v382
  %v407 = vcvt.f32.s32.to.zero.pseudo %v384
  %v408 = vcvt.f32.s32.to.zero.pseudo %v386
  %v409 = vcvt.f32.s32.to.zero.pseudo %v388
  %v410 = vcvt.f32.s32.to.zero.pseudo %v390
  %v411 = vcvt.f32.s32.to.zero.pseudo %v392
  %v412 = vcvt.f32.s32.to.zero.pseudo %v394
  %v413 = vcvt.f32.s32.to.zero.pseudo %v396
  %v414 = vcvt.f32.s32.to.zero.pseudo %v398
  %vm415 = vcmp.eq.f32.partialorder %v349, %v368
  %vm416 = vcmp.eq.f32.partialorder %v349, %v370
  %vm417 = vcmp.eq.f32.partialorder %v349, %v372
  %vm418 = vcmp.eq.f32.partialorder %v349, %v374
  %vm419 = vcmp.eq.f32.partialorder %v349, %v376
  %vm420 = vcmp.eq.f32.partialorder %v349, %v378
  %vm421 = vcmp.eq.f32.partialorder %v349, %v380
  %vm422 = vcmp.eq.f32.partialorder %v349, %v382
  %vm423 = vcmp.eq.f32.partialorder %v349, %v384
  %vm424 = vcmp.eq.f32.partialorder %v349, %v386
  %vm425 = vcmp.eq.f32.partialorder %v349, %v388
  %vm426 = vcmp.eq.f32.partialorder %v349, %v390
  %vm427 = vcmp.eq.f32.partialorder %v349, %v392
  %vm428 = vcmp.eq.f32.partialorder %v349, %v394
  %vm429 = vcmp.eq.f32.partialorder %v349, %v396
  %vm430 = vcmp.eq.f32.partialorder %v349, %v398
  %v431 = vsel %vm415, 1, 0
  %v432 = vsel %vm416, 1, 0
  %v433 = vsel %vm417, 1, 0
  %v434 = vsel %vm418, 1, 0
  %v435 = vsel %vm419, 1, 0
  %v436 = vsel %vm420, 1, 0
  %v437 = vsel %vm421, 1, 0
  %v438 = vsel %vm422, 1, 0
  %v439 = vsel %vm423, 1, 0
  %v440 = vsel %vm424, 1, 0
  %v441 = vsel %vm425, 1, 0
  %v442 = vsel %vm426, 1, 0
  %v443 = vsel %vm427, 1, 0
  %v444 = vsel %vm428, 1, 0
  %v445 = vsel %vm429, 1, 0
  %v446 = vsel %vm430, 1, 0
  %v447 = vcvt.s32.f32 %v431
  %v448 = vcvt.s32.f32 %v432
  %v449 = vcvt.s32.f32 %v433
  %v450 = vcvt.s32.f32 %v434
  %v451 = vcvt.s32.f32 %v435
  %v452 = vcvt.s32.f32 %v436
  %v453 = vcvt.s32.f32 %v437
  %v454 = vcvt.s32.f32 %v438
  %v455 = vcvt.s32.f32 %v439
  %v456 = vcvt.s32.f32 %v440
  %v457 = vcvt.s32.f32 %v441
  %v458 = vcvt.s32.f32 %v442
  %v459 = vcvt.s32.f32 %v443
  %v460 = vcvt.s32.f32 %v444
  %v461 = vcvt.s32.f32 %v445
  %v462 = vcvt.s32.f32 %v446
  %v463 = vld [vmem:[%s2] sm:$0xff]
  %v464 = vld [vmem:[%s2 + $0x8] sm:$0xff]
  %v465 = vld [vmem:[%s2 + $0x10] sm:$0xff]
  %v466 = vld [vmem:[%s2 + $0x18] sm:$0xff]
  %v467 = vld [vmem:[%s2 + $0x20] sm:$0xff]
  %v468 = vld [vmem:[%s2 + $0x28] sm:$0xff]
  %v469 = vld [vmem:[%s2 + $0x30] sm:$0xff]
  %v470 = vld [vmem:[%s2 + $0x38] sm:$0xff]
  %v471 = vld [vmem:[%s2 + $0x40] sm:$0xff]
  %v472 = vld [vmem:[%s2 + $0x48] sm:$0xff]
  %v473 = vld [vmem:[%s2 + $0x50] sm:$0xff]
  %v474 = vld [vmem:[%s2 + $0x58] sm:$0xff]
  %v475 = vld [vmem:[%s2 + $0x60] sm:$0xff]
  %v476 = vld [vmem:[%s2 + $0x68] sm:$0xff]
  %v477 = vld [vmem:[%s2 + $0x70] sm:$0xff]
  %v478 = vld [vmem:[%s2 + $0x78] sm:$0xff]
  %479 = vmatprep.subr.mxu0 0.0
  %480 = vmatpush1.msra.mxu0 %v463
  %481 = vmatprep.subr.mxu0 0.0
  %482 = vmatpush1.msra.mxu0 %v464
  %483 = vmatprep.subr.mxu0 0.0
  %484 = vmatpush1.msra.mxu0 %v465
  %485 = vmatprep.subr.mxu0 0.0
  %486 = vmatpush1.msra.mxu0 %v466
  %487 = vmatprep.subr.mxu0 0.0
  %488 = vmatpush1.msra.mxu0 %v467
  %489 = vmatprep.subr.mxu0 0.0
  %490 = vmatpush1.msra.mxu0 %v468
  %491 = vmatprep.subr.mxu0 0.0
  %492 = vmatpush1.msra.mxu0 %v469
  %493 = vmatprep.subr.mxu0 0.0
  %494 = vmatpush1.msra.mxu0 %v470
  %495 = vmatprep.subr.mxu0 0.0
  %496 = vmatpush1.msra.mxu0 %v471
  %497 = vmatprep.subr.mxu0 0.0
  %498 = vmatpush1.msra.mxu0 %v472
  %499 = vmatprep.subr.mxu0 0.0
  %500 = vmatpush1.msra.mxu0 %v473
  %501 = vmatprep.subr.mxu0 0.0
  %502 = vmatpush1.msra.mxu0 %v474
  %503 = vmatprep.subr.mxu0 0.0
  %504 = vmatpush1.msra.mxu0 %v475
  %505 = vmatprep.subr.mxu0 0.0
  %506 = vmatpush1.msra.mxu0 %v476
  %507 = vmatprep.subr.mxu0 0.0
  %508 = vmatpush1.msra.mxu0 %v477
  %509 = vmatprep.subr.mxu0 0.0
  %510 = vmatpush1.msra.mxu0 %v478
  %511 = vmatprep.subr.mxu0 0.0
  %512 = vmatpush1.msra.mxu0 0.0
  %513 = vmatprep.subr.mxu0 0.0
  %514 = vmatpush1.msra.mxu0 0.0
  %515 = vmatprep.subr.mxu0 0.0
  %516 = vmatpush1.msra.mxu0 0.0
  %517 = vmatprep.subr.mxu0 0.0
  %518 = vmatpush1.msra.mxu0 0.0
  %519 = vmatprep.subr.mxu0 0.0
  %520 = vmatpush1.msra.mxu0 0.0
  %521 = vmatprep.subr.mxu0 0.0
  %522 = vmatpush1.msra.mxu0 0.0
  %523 = vmatprep.subr.mxu0 0.0
  %524 = vmatpush1.msra.mxu0 0.0
  %525 = vmatprep.subr.mxu0 0.0
  %526 = vmatpush1.msra.mxu0 0.0
  %527 = vmatprep.subr.mxu0 0.0
  %528 = vmatpush1.msra.mxu0 0.0
  %529 = vmatprep.subr.mxu0 0.0
  %530 = vmatpush1.msra.mxu0 0.0
  %531 = vmatprep.subr.mxu0 0.0
  %532 = vmatpush1.msra.mxu0 0.0
  %533 = vmatprep.subr.mxu0 0.0
  %534 = vmatpush1.msra.mxu0 0.0
  %535 = vmatprep.subr.mxu0 0.0
  %536 = vmatpush1.msra.mxu0 0.0
  %537 = vmatprep.subr.mxu0 0.0
  %538 = vmatpush1.msra.mxu0 0.0
  %539 = vmatprep.subr.mxu0 0.0
  %540 = vmatpush1.msra.mxu0 0.0
  %541 = vmatprep.subr.mxu0 0.0
  %542 = vmatpush1.msra.mxu0 0.0
  %543 = vmatprep.mubr.f32.mxu0 0.0
  %544 = vmatmul.mubr.f32.gmra.mrb[0].mxu0 %v447
  %v545 = vpop.f32.mrb[0].mxu0
  %v546 = vadd.f32 0.0, %v545
  %v547 = vpop.f32.mrb[0].mxu0
  %548 = vmatprep.mubr.f32.mxu0 0.0
  %549 = vmatmul.mubr.f32.gmra.mrb[0].mxu0 %v448
  %v550 = vpop.f32.mrb[0].mxu0
  %v551 = vadd.f32 0.0, %v550
  %v552 = vpop.f32.mrb[0].mxu0
  %553 = vmatprep.mubr.f32.mxu0 0.0
  %554 = vmatmul.mubr.f32.gmra.mrb[0].mxu0 %v449
  %v555 = vpop.f32.mrb[0].mxu0
  %v556 = vadd.f32 0.0, %v555
  %v557 = vpop.f32.mrb[0].mxu0
  %558 = vmatprep.mubr.f32.mxu0 0.0
  %559 = vmatmul.mubr.f32.gmra.mrb[0].mxu0 %v450
  %v560 = vpop.f32.mrb[0].mxu0
  %v561 = vadd.f32 0.0, %v560
  %v562 = vpop.f32.mrb[0].mxu0
  %563 = vmatprep.mubr.f32.mxu0 0.0
  %564 = vmatmul.mubr.f32.gmra.mrb[0].mxu0 %v451
  %v565 = vpop.f32.mrb[0].mxu0
  %v566 = vadd.f32 0.0, %v565
  %v567 = vpop.f32.mrb[0].mxu0
  %568 = vmatprep.mubr.f32.mxu0 0.0
  %569 = vmatmul.mubr.f32.gmra.mrb[0].mxu0 %v452
  %v570 = vpop.f32.mrb[0].mxu0
  %v571 = vadd.f32 0.0, %v570
  %v572 = vpop.f32.mrb[0].mxu0
  %573 = vmatprep.mubr.f32.mxu0 0.0
  %574 = vmatmul.mubr.f32.gmra.mrb[0].mxu0 %v453
  %v575 = vpop.f32.mrb[0].mxu0
  %v576 = vadd.f32 0.0, %v575
  %v577 = vpop.f32.mrb[0].mxu0
  %578 = vmatprep.mubr.f32.mxu0 0.0
  %579 = vmatmul.mubr.f32.gmra.mrb[0].mxu0 %v454
  %v580 = vpop.f32.mrb[0].mxu0
  %v581 = vadd.f32 0.0, %v580
  %v582 = vpop.f32.mrb[0].mxu0
  %583 = vmatprep.mubr.f32.mxu0 0.0
  %584 = vmatmul.mubr.f32.gmra.mrb[0].mxu0 %v455
  %v585 = vpop.f32.mrb[0].mxu0
  %v586 = vadd.f32 0.0, %v585
  %v587 = vpop.f32.mrb[0].mxu0
  %588 = vmatprep.mubr.f32.mxu0 0.0
  %589 = vmatmul.mubr.f32.gmra.mrb[0].mxu0 %v456
  %v590 = vpop.f32.mrb[0].mxu0
  %v591 = vadd.f32 0.0, %v590
  %v592 = vpop.f32.mrb[0].mxu0
  %593 = vmatprep.mubr.f32.mxu0 0.0
  %594 = vmatmul.mubr.f32.gmra.mrb[0].mxu0 %v457
  %v595 = vpop.f32.mrb[0].mxu0
  %v596 = vadd.f32 0.0, %v595
  %v597 = vpop.f32.mrb[0].mxu0
  %598 = vmatprep.mubr.f32.mxu0 0.0
  %599 = vmatmul.mubr.f32.gmra.mrb[0].mxu0 %v458
  %v600 = vpop.f32.mrb[0].mxu0
  %v601 = vadd.f32 0.0, %v600
  %v602 = vpop.f32.mrb[0].mxu0
  %603 = vmatprep.mubr.f32.mxu0 0.0
  %604 = vmatmul.mubr.f32.gmra.mrb[0].mxu0 %v459
  %v605 = vpop.f32.mrb[0].mxu0
  %v606 = vadd.f32 0.0, %v605
  %v607 = vpop.f32.mrb[0].mxu0
  %608 = vmatprep.mubr.f32.mxu0 0.0
  %609 = vmatmul.mubr.f32.gmra.mrb[0].mxu0 %v460
  %v610 = vpop.f32.mrb[0].mxu0
  %v611 = vadd.f32 0.0, %v610
  %v612 = vpop.f32.mrb[0].mxu0
  %613 = vmatprep.mubr.f32.mxu0 0.0
  %614 = vmatmul.mubr.f32.gmra.mrb[0].mxu0 %v461
  %v615 = vpop.f32.mrb[0].mxu0
  %v616 = vadd.f32 0.0, %v615
  %v617 = vpop.f32.mrb[0].mxu0
  %618 = vmatprep.mubr.f32.mxu0 0.0
  %619 = vmatmul.mubr.f32.gmra.mrb[0].mxu0 %v462
  %v620 = vpop.f32.mrb[0].mxu0
  %v621 = vadd.f32 0.0, %v620
  %v622 = vpop.f32.mrb[0].mxu0
  %623 = vdwg.mxu0
  %v624 = vld [vmem:[#allocation2] sm:$0xff]
  %v625 = vld [vmem:[#allocation2 + $0x8] sm:$0xff]
  %v626 = vld [vmem:[#allocation2 + $0x10] sm:$0xff]
  %v627 = vld [vmem:[#allocation2 + $0x18] sm:$0xff]
  %v628 = vld [vmem:[#allocation2 + $0x20] sm:$0xff]
  %v629 = vld [vmem:[#allocation2 + $0x28] sm:$0xff]
  %v630 = vld [vmem:[#allocation2 + $0x30] sm:$0xff]
  %v631 = vld [vmem:[#allocation2 + $0x38] sm:$0xff]
  %v632 = vld [vmem:[#allocation2 + $0x40] sm:$0xff]
  %v633 = vld [vmem:[#allocation2 + $0x48] sm:$0xff]
  %v634 = vld [vmem:[#allocation2 + $0x50] sm:$0xff]
  %v635 = vld [vmem:[#allocation2 + $0x58] sm:$0xff]
  %v636 = vld [vmem:[#allocation2 + $0x60] sm:$0xff]
  %v637 = vld [vmem:[#allocation2 + $0x68] sm:$0xff]
  %v638 = vld [vmem:[#allocation2 + $0x70] sm:$0xff]
  %v639 = vld [vmem:[#allocation2 + $0x78] sm:$0xff]
  %vm640 = vcmp.lt.f32.partialorder %v298, %v624
  %vm641 = vcmp.lt.f32.partialorder %v300, %v625
  %vm642 = vcmp.lt.f32.partialorder %v302, %v626
  %vm643 = vcmp.lt.f32.partialorder %v304, %v627
  %vm644 = vcmp.lt.f32.partialorder %v306, %v628
  %vm645 = vcmp.lt.f32.partialorder %v308, %v629
  %vm646 = vcmp.lt.f32.partialorder %v310, %v630
  %vm647 = vcmp.lt.f32.partialorder %v312, %v631
  %vm648 = vcmp.lt.f32.partialorder %v314, %v632
  %vm649 = vcmp.lt.f32.partialorder %v316, %v633
  %vm650 = vcmp.lt.f32.partialorder %v318, %v634
  %vm651 = vcmp.lt.f32.partialorder %v320, %v635
  %vm652 = vcmp.lt.f32.partialorder %v322, %v636
  %vm653 = vcmp.lt.f32.partialorder %v324, %v637
  %vm654 = vcmp.lt.f32.partialorder %v326, %v638
  %vm655 = vcmp.lt.f32.partialorder %v328, %v639
  %v656 = vsel %vm640, %v298, %v624
  %v657 = vsel %vm641, %v300, %v625
  %v658 = vsel %vm642, %v302, %v626
  %v659 = vsel %vm643, %v304, %v627
  %v660 = vsel %vm644, %v306, %v628
  %v661 = vsel %vm645, %v308, %v629
  %v662 = vsel %vm646, %v310, %v630
  %v663 = vsel %vm647, %v312, %v631
  %v664 = vsel %vm648, %v314, %v632
  %v665 = vsel %vm649, %v316, %v633
  %v666 = vsel %vm650, %v318, %v634
  %v667 = vsel %vm651, %v320, %v635
  %v668 = vsel %vm652, %v322, %v636
  %v669 = vsel %vm653, %v324, %v637
  %v670 = vsel %vm654, %v326, %v638
  %v671 = vsel %vm655, %v328, %v639
  %vm672 = vcmask 7168
  %673 = vst.msk [vmem:[#allocation2] sm:$0xff] %vm672, %v656
  %674 = vst.msk [vmem:[#allocation2 + $0x8] sm:$0xff] %vm672, %v657
  %675 = vst.msk [vmem:[#allocation2 + $0x10] sm:$0xff] %vm672, %v658
  %676 = vst.msk [vmem:[#allocation2 + $0x18] sm:$0xff] %vm672, %v659
  %677 = vst.msk [vmem:[#allocation2 + $0x20] sm:$0xff] %vm672, %v660
  %678 = vst.msk [vmem:[#allocation2 + $0x28] sm:$0xff] %vm672, %v661
  %679 = vst.msk [vmem:[#allocation2 + $0x30] sm:$0xff] %vm672, %v662
  %680 = vst.msk [vmem:[#allocation2 + $0x38] sm:$0xff] %vm672, %v663
  %681 = vst.msk [vmem:[#allocation2 + $0x40] sm:$0xff] %vm672, %v664
  %682 = vst.msk [vmem:[#allocation2 + $0x48] sm:$0xff] %vm672, %v665
  %683 = vst.msk [vmem:[#allocation2 + $0x50] sm:$0xff] %vm672, %v666
  %684 = vst.msk [vmem:[#allocation2 + $0x58] sm:$0xff] %vm672, %v667
  %685 = vst.msk [vmem:[#allocation2 + $0x60] sm:$0xff] %vm672, %v668
  %686 = vst.msk [vmem:[#allocation2 + $0x68] sm:$0xff] %vm672, %v669
  %687 = vst.msk [vmem:[#allocation2 + $0x70] sm:$0xff] %vm672, %v670
  %688 = vst.msk [vmem:[#allocation2 + $0x78] sm:$0xff] %vm672, %v671
  %v689 = vld [vmem:[#allocation3] sm:$0xff]
  %v690 = vld [vmem:[#allocation3 + $0x8] sm:$0xff]
  %v691 = vld [vmem:[#allocation3 + $0x10] sm:$0xff]
  %v692 = vld [vmem:[#allocation3 + $0x18] sm:$0xff]
  %v693 = vld [vmem:[#allocation3 + $0x20] sm:$0xff]
  %v694 = vld [vmem:[#allocation3 + $0x28] sm:$0xff]
  %v695 = vld [vmem:[#allocation3 + $0x30] sm:$0xff]
  %v696 = vld [vmem:[#allocation3 + $0x38] sm:$0xff]
  %v697 = vld [vmem:[#allocation3 + $0x40] sm:$0xff]
  %v698 = vld [vmem:[#allocation3 + $0x48] sm:$0xff]
  %v699 = vld [vmem:[#allocation3 + $0x50] sm:$0xff]
  %v700 = vld [vmem:[#allocation3 + $0x58] sm:$0xff]
  %v701 = vld [vmem:[#allocation3 + $0x60] sm:$0xff]
  %v702 = vld [vmem:[#allocation3 + $0x68] sm:$0xff]
  %v703 = vld [vmem:[#allocation3 + $0x70] sm:$0xff]
  %v704 = vld [vmem:[#allocation3 + $0x78] sm:$0xff]
  %v705 = vsel %vm640, %v399, %v689
  %v706 = vsel %vm641, %v400, %v690
  %v707 = vsel %vm642, %v401, %v691
  %v708 = vsel %vm643, %v402, %v692
  %v709 = vsel %vm644, %v403, %v693
  %v710 = vsel %vm645, %v404, %v694
  %v711 = vsel %vm646, %v405, %v695
  %v712 = vsel %vm647, %v406, %v696
  %v713 = vsel %vm648, %v407, %v697
  %v714 = vsel %vm649, %v408, %v698
  %v715 = vsel %vm650, %v409, %v699
  %v716 = vsel %vm651, %v410, %v700
  %v717 = vsel %vm652, %v411, %v701
  %v718 = vsel %vm653, %v412, %v702
  %v719 = vsel %vm654, %v413, %v703
  %v720 = vsel %vm655, %v414, %v704
  %721 = vst.msk [vmem:[#allocation3] sm:$0xff] %vm672, %v705
  %722 = vst.msk [vmem:[#allocation3 + $0x8] sm:$0xff] %vm672, %v706
  %723 = vst.msk [vmem:[#allocation3 + $0x10] sm:$0xff] %vm672, %v707
  %724 = vst.msk [vmem:[#allocation3 + $0x18] sm:$0xff] %vm672, %v708
  %725 = vst.msk [vmem:[#allocation3 + $0x20] sm:$0xff] %vm672, %v709
  %726 = vst.msk [vmem:[#allocation3 + $0x28] sm:$0xff] %vm672, %v710
  %727 = vst.msk [vmem:[#allocation3 + $0x30] sm:$0xff] %vm672, %v711
  %728 = vst.msk [vmem:[#allocation3 + $0x38] sm:$0xff] %vm672, %v712
  %729 = vst.msk [vmem:[#allocation3 + $0x40] sm:$0xff] %vm672, %v713
  %730 = vst.msk [vmem:[#allocation3 + $0x48] sm:$0xff] %vm672, %v714
  %731 = vst.msk [vmem:[#allocation3 + $0x50] sm:$0xff] %vm672, %v715
  %732 = vst.msk [vmem:[#allocation3 + $0x58] sm:$0xff] %vm672, %v716
  %733 = vst.msk [vmem:[#allocation3 + $0x60] sm:$0xff] %vm672, %v717
  %734 = vst.msk [vmem:[#allocation3 + $0x68] sm:$0xff] %vm672, %v718
  %735 = vst.msk [vmem:[#allocation3 + $0x70] sm:$0xff] %vm672, %v719
  %736 = vst.msk [vmem:[#allocation3 + $0x78] sm:$0xff] %vm672, %v720
  %v737 = vld [vmem:[#allocation4] sm:$0xff]
  %v738 = vld [vmem:[#allocation4 + $0x8] sm:$0xff]
  %v739 = vld [vmem:[#allocation4 + $0x10] sm:$0xff]
  %v740 = vld [vmem:[#allocation4 + $0x18] sm:$0xff]
  %v741 = vld [vmem:[#allocation4 + $0x20] sm:$0xff]
  %v742 = vld [vmem:[#allocation4 + $0x28] sm:$0xff]
  %v743 = vld [vmem:[#allocation4 + $0x30] sm:$0xff]
  %v744 = vld [vmem:[#allocation4 + $0x38] sm:$0xff]
  %v745 = vld [vmem:[#allocation4 + $0x40] sm:$0xff]
  %v746 = vld [vmem:[#allocation4 + $0x48] sm:$0xff]
  %v747 = vld [vmem:[#allocation4 + $0x50] sm:$0xff]
  %v748 = vld [vmem:[#allocation4 + $0x58] sm:$0xff]
  %v749 = vld [vmem:[#allocation4 + $0x60] sm:$0xff]
  %v750 = vld [vmem:[#allocation4 + $0x68] sm:$0xff]
  %v751 = vld [vmem:[#allocation4 + $0x70] sm:$0xff]
  %v752 = vld [vmem:[#allocation4 + $0x78] sm:$0xff]
  %v753 = vsel %vm640, 1, 0
  %v754 = vsel %vm641, 1, 0
  %v755 = vsel %vm642, 1, 0
  %v756 = vsel %vm643, 1, 0
  %v757 = vsel %vm644, 1, 0
  %v758 = vsel %vm645, 1, 0
  %v759 = vsel %vm646, 1, 0
  %v760 = vsel %vm647, 1, 0
  %v761 = vsel %vm648, 1, 0
  %v762 = vsel %vm649, 1, 0
  %v763 = vsel %vm650, 1, 0
  %v764 = vsel %vm651, 1, 0
  %v765 = vsel %vm652, 1, 0
  %v766 = vsel %vm653, 1, 0
  %v767 = vsel %vm654, 1, 0
  %v768 = vsel %vm655, 1, 0
  %769 = vset.pattern.permute.xlu0 0
  %770 = vperm.xlu0 %769, %v753
  %v771 = vpop.permute.xlu0 %770
  %772 = vset.pattern.permute.xlu0 0
  %773 = vperm.xlu0 %772, %v754
  %v774 = vpop.permute.xlu0 %773
  %775 = vset.pattern.permute.xlu0 0
  %776 = vperm.xlu0 %775, %v755
  %v777 = vpop.permute.xlu0 %776
  %778 = vset.pattern.permute.xlu0 0
  %779 = vperm.xlu0 %778, %v756
  %v780 = vpop.permute.xlu0 %779
  %781 = vset.pattern.permute.xlu0 0
  %782 = vperm.xlu0 %781, %v757
  %v783 = vpop.permute.xlu0 %782
  %784 = vset.pattern.permute.xlu0 0
  %785 = vperm.xlu0 %784, %v758
  %v786 = vpop.permute.xlu0 %785
  %787 = vset.pattern.permute.xlu0 0
  %788 = vperm.xlu0 %787, %v759
  %v789 = vpop.permute.xlu0 %788
  %790 = vset.pattern.permute.xlu0 0
  %791 = vperm.xlu0 %790, %v760
  %v792 = vpop.permute.xlu0 %791
  %793 = vset.pattern.permute.xlu0 0
  %794 = vperm.xlu0 %793, %v761
  %v795 = vpop.permute.xlu0 %794
  %796 = vset.pattern.permute.xlu0 0
  %797 = vperm.xlu0 %796, %v762
  %v798 = vpop.permute.xlu0 %797
  %799 = vset.pattern.permute.xlu0 0
  %800 = vperm.xlu0 %799, %v763
  %v801 = vpop.permute.xlu0 %800
  %802 = vset.pattern.permute.xlu0 0
  %803 = vperm.xlu0 %802, %v764
  %v804 = vpop.permute.xlu0 %803
  %805 = vset.pattern.permute.xlu0 0
  %806 = vperm.xlu0 %805, %v765
  %v807 = vpop.permute.xlu0 %806
  %808 = vset.pattern.permute.xlu0 0
  %809 = vperm.xlu0 %808, %v766
  %v810 = vpop.permute.xlu0 %809
  %811 = vset.pattern.permute.xlu0 0
  %812 = vperm.xlu0 %811, %v767
  %v813 = vpop.permute.xlu0 %812
  %814 = vset.pattern.permute.xlu0 0
  %815 = vperm.xlu0 %814, %v768
  %v816 = vpop.permute.xlu0 %815
  %vm817 = vcmp.eq.s32.totalorder %v771, 1
  %vm818 = vcmp.eq.s32.totalorder %v774, 1
  %vm819 = vcmp.eq.s32.totalorder %v777, 1
  %vm820 = vcmp.eq.s32.totalorder %v780, 1
  %vm821 = vcmp.eq.s32.totalorder %v783, 1
  %vm822 = vcmp.eq.s32.totalorder %v786, 1
  %vm823 = vcmp.eq.s32.totalorder %v789, 1
  %vm824 = vcmp.eq.s32.totalorder %v792, 1
  %vm825 = vcmp.eq.s32.totalorder %v795, 1
  %vm826 = vcmp.eq.s32.totalorder %v798, 1
  %vm827 = vcmp.eq.s32.totalorder %v801, 1
  %vm828 = vcmp.eq.s32.totalorder %v804, 1
  %vm829 = vcmp.eq.s32.totalorder %v807, 1
  %vm830 = vcmp.eq.s32.totalorder %v810, 1
  %vm831 = vcmp.eq.s32.totalorder %v813, 1
  %vm832 = vcmp.eq.s32.totalorder %v816, 1
  %v833 = vsel %vm817, %v546, %v737
  %v834 = vsel %vm818, %v551, %v738
  %v835 = vsel %vm819, %v556, %v739
  %v836 = vsel %vm820, %v561, %v740
  %v837 = vsel %vm821, %v566, %v741
  %v838 = vsel %vm822, %v571, %v742
  %v839 = vsel %vm823, %v576, %v743
  %v840 = vsel %vm824, %v581, %v744
  %v841 = vsel %vm825, %v586, %v745
  %v842 = vsel %vm826, %v591, %v746
  %v843 = vsel %vm827, %v596, %v747
  %v844 = vsel %vm828, %v601, %v748
  %v845 = vsel %vm829, %v606, %v749
  %v846 = vsel %vm830, %v611, %v750
  %v847 = vsel %vm831, %v616, %v751
  %v848 = vsel %vm832, %v621, %v752
  %849 = vst.msk [vmem:[#allocation4] sm:$0xff] %vm103, %v833
  %850 = vst.msk [vmem:[#allocation4 + $0x8] sm:$0xff] %vm103, %v834
  %851 = vst.msk [vmem:[#allocation4 + $0x10] sm:$0xff] %vm103, %v835
  %852 = vst.msk [vmem:[#allocation4 + $0x18] sm:$0xff] %vm103, %v836
  %853 = vst.msk [vmem:[#allocation4 + $0x20] sm:$0xff] %vm103, %v837
  %854 = vst.msk [vmem:[#allocation4 + $0x28] sm:$0xff] %vm103, %v838
  %855 = vst.msk [vmem:[#allocation4 + $0x30] sm:$0xff] %vm103, %v839
  %856 = vst.msk [vmem:[#allocation4 + $0x38] sm:$0xff] %vm103, %v840
  %857 = vst.msk [vmem:[#allocation4 + $0x40] sm:$0xff] %vm103, %v841
  %858 = vst.msk [vmem:[#allocation4 + $0x48] sm:$0xff] %vm103, %v842
  %859 = vst.msk [vmem:[#allocation4 + $0x50] sm:$0xff] %vm103, %v843
  %860 = vst.msk [vmem:[#allocation4 + $0x58] sm:$0xff] %vm103, %v844
  %861 = vst.msk [vmem:[#allocation4 + $0x60] sm:$0xff] %vm103, %v845
  %862 = vst.msk [vmem:[#allocation4 + $0x68] sm:$0xff] %vm103, %v846
  %863 = vst.msk [vmem:[#allocation4 + $0x70] sm:$0xff] %vm103, %v847
  %864 = vst.msk [vmem:[#allocation4 + $0x78] sm:$0xff] %vm103, %v848
  // Predicated region
  $region26: #{quantize_forward.1} parent=0 // pred_check
    %p865 = pneg %p22
  $region27: #{quantize_forward.1} parent=0 // pred_check_branch
    %867 = sbr.rel (%p865) target = $region29
  $region28: #{quantize_forward.1} parent=0 // pred_region
    %v868 = vld [vmem:[#allocation4] sm:$0xff]
    %v869 = vld [vmem:[#allocation4 + $0x8] sm:$0xff]
    %v870 = vld [vmem:[#allocation4 + $0x10] sm:$0xff]
    %v871 = vld [vmem:[#allocation4 + $0x18] sm:$0xff]
    %v872 = vld [vmem:[#allocation4 + $0x20] sm:$0xff]
    %v873 = vld [vmem:[#allocation4 + $0x28] sm:$0xff]
    %v874 = vld [vmem:[#allocation4 + $0x30] sm:$0xff]
    %v875 = vld [vmem:[#allocation4 + $0x38] sm:$0xff]
    %v876 = vld [vmem:[#allocation4 + $0x40] sm:$0xff]
    %v877 = vld [vmem:[#allocation4 + $0x48] sm:$0xff]
    %v878 = vld [vmem:[#allocation4 + $0x50] sm:$0xff]
    %v879 = vld [vmem:[#allocation4 + $0x58] sm:$0xff]
    %v880 = vld [vmem:[#allocation4 + $0x60] sm:$0xff]
    %v881 = vld [vmem:[#allocation4 + $0x68] sm:$0xff]
    %v882 = vld [vmem:[#allocation4 + $0x70] sm:$0xff]
    %v883 = vld [vmem:[#allocation4 + $0x78] sm:$0xff]
    %884 = vst.msk [vmem:[%s5] sm:$0xff] %vm103, %v868
    %885 = vst.msk [vmem:[%s5 + $0x8] sm:$0xff] %vm103, %v869
    %886 = vst.msk [vmem:[%s5 + $0x10] sm:$0xff] %vm103, %v870
    %887 = vst.msk [vmem:[%s5 + $0x18] sm:$0xff] %vm103, %v871
    %888 = vst.msk [vmem:[%s5 + $0x20] sm:$0xff] %vm103, %v872
    %889 = vst.msk [vmem:[%s5 + $0x28] sm:$0xff] %vm103, %v873
    %890 = vst.msk [vmem:[%s5 + $0x30] sm:$0xff] %vm103, %v874
    %891 = vst.msk [vmem:[%s5 + $0x38] sm:$0xff] %vm103, %v875
    %892 = vst.msk [vmem:[%s5 + $0x40] sm:$0xff] %vm103, %v876
    %893 = vst.msk [vmem:[%s5 + $0x48] sm:$0xff] %vm103, %v877
    %894 = vst.msk [vmem:[%s5 + $0x50] sm:$0xff] %vm103, %v878
    %895 = vst.msk [vmem:[%s5 + $0x58] sm:$0xff] %vm103, %v879
    %896 = vst.msk [vmem:[%s5 + $0x60] sm:$0xff] %vm103, %v880
    %897 = vst.msk [vmem:[%s5 + $0x68] sm:$0xff] %vm103, %v881
    %898 = vst.msk [vmem:[%s5 + $0x70] sm:$0xff] %vm103, %v882
    %899 = vst.msk [vmem:[%s5 + $0x78] sm:$0xff] %vm103, %v883
    %v900 = vld [vmem:[#allocation3] sm:$0xff]
    %v901 = vld [vmem:[#allocation3 + $0x8] sm:$0xff]
    %v902 = vld [vmem:[#allocation3 + $0x10] sm:$0xff]
    %v903 = vld [vmem:[#allocation3 + $0x18] sm:$0xff]
    %v904 = vld [vmem:[#allocation3 + $0x20] sm:$0xff]
    %v905 = vld [vmem:[#allocation3 + $0x28] sm:$0xff]
    %v906 = vld [vmem:[#allocation3 + $0x30] sm:$0xff]
    %v907 = vld [vmem:[#allocation3 + $0x38] sm:$0xff]
    %v908 = vld [vmem:[#allocation3 + $0x40] sm:$0xff]
    %v909 = vld [vmem:[#allocation3 + $0x48] sm:$0xff]
    %v910 = vld [vmem:[#allocation3 + $0x50] sm:$0xff]
    %v911 = vld [vmem:[#allocation3 + $0x58] sm:$0xff]
    %v912 = vld [vmem:[#allocation3 + $0x60] sm:$0xff]
    %v913 = vld [vmem:[#allocation3 + $0x68] sm:$0xff]
    %v914 = vld [vmem:[#allocation3 + $0x70] sm:$0xff]
    %v915 = vld [vmem:[#allocation3 + $0x78] sm:$0xff]
    %916 = vst.msk [vmem:[%s6] sm:$0xff] %vm672, %v900
    %917 = vst.msk [vmem:[%s6 + $0x8] sm:$0xff] %vm672, %v901
    %918 = vst.msk [vmem:[%s6 + $0x10] sm:$0xff] %vm672, %v902
    %919 = vst.msk [vmem:[%s6 + $0x18] sm:$0xff] %vm672, %v903
    %920 = vst.msk [vmem:[%s6 + $0x20] sm:$0xff] %vm672, %v904
    %921 = vst.msk [vmem:[%s6 + $0x28] sm:$0xff] %vm672, %v905
    %922 = vst.msk [vmem:[%s6 + $0x30] sm:$0xff] %vm672, %v906
    %923 = vst.msk [vmem:[%s6 + $0x38] sm:$0xff] %vm672, %v907
    %924 = vst.msk [vmem:[%s6 + $0x40] sm:$0xff] %vm672, %v908
    %925 = vst.msk [vmem:[%s6 + $0x48] sm:$0xff] %vm672, %v909
    %926 = vst.msk [vmem:[%s6 + $0x50] sm:$0xff] %vm672, %v910
    %927 = vst.msk [vmem:[%s6 + $0x58] sm:$0xff] %vm672, %v911
    %928 = vst.msk [vmem:[%s6 + $0x60] sm:$0xff] %vm672, %v912
    %929 = vst.msk [vmem:[%s6 + $0x68] sm:$0xff] %vm672, %v913
    %930 = vst.msk [vmem:[%s6 + $0x70] sm:$0xff] %vm672, %v914
    %931 = vst.msk [vmem:[%s6 + $0x78] sm:$0xff] %vm672, %v915
  $region29: #{quantize_forward.1} parent=0 // pred_fallthru
    _
  // Predicated region
  $region30: #{quantize_forward.1} parent=0 // pred_check
    _
  $region31: #{quantize_forward.1} parent=0 // pred_check_branch
    %933 = sbr.rel (0) target = $region33
  $region32: #{quantize_forward.1} parent=0 // pred_region
    _
  $region33: #{quantize_forward.1} parent=0 // pred_fallthru
    _
  // Predicated region
  $region34: #{quantize_forward.1} parent=0 // pred_check
    _
  $region35: #{quantize_forward.1} parent=0 // pred_check_branch
    %935 = sbr.rel (0) target = $region37
  $region36: #{quantize_forward.1} parent=0 // pred_region
    _
  $region37: #{quantize_forward.1} parent=0 // pred_fallthru
    _
  // Predicated region
  $region38: #{quantize_forward.1} parent=0 // pred_check
    _
  $region39: #{quantize_forward.1} parent=0 // pred_check_branch
    %937 = sbr.rel (0) target = $region41
  $region40: #{quantize_forward.1} parent=0 // pred_region
    _
  $region41: #{quantize_forward.1} parent=0 // pred_fallthru
    _
  // Predicated region
  $region42: #{quantize_forward.1} parent=0 // pred_check
    _
  $region43: #{quantize_forward.1} parent=0 // pred_check_branch
    %939 = sbr.rel (0) target = $region45
  $region44: #{quantize_forward.1} parent=0 // pred_region
    _
  $region45: #{quantize_forward.1} parent=0 // pred_fallthru
    _

</llo_original>
